<compile_context>
chip_gen: v7x
topology: tpu7x:2x2x1
jax: 0.10.0
libtpu: 0.0.40
codegen_flags: <defaults>
</compile_context>

<pallas_src>
import functools

import jax
import jax.numpy as jnp
from jax import lax
from jax.experimental import pallas as pl
from jax.experimental.pallas import tpu as pltpu

_LANES = 128


# ---------------------------------------------------------------------------
# Kernel: packed-table in-vreg lane gather.
# ---------------------------------------------------------------------------
def _embed_kernel(src_ref, lnk_ref, tbl_ref, out_ref, *, chunk_rows, x_off, y_off):
    tm = src_ref.shape[0]                      # block rows (static)
    n_chunks = tm // chunk_rows
    lane_mask = _LANES - 1

    # Broadcast the packed 128-lane table across `chunk_rows` sublanes ONCE
    # (hoisted out of the chunk loop; only chunk_rows/8 vregs live).
    tbl = jnp.broadcast_to(tbl_ref[...], (chunk_rows, _LANES))

    def body(c, carry):
        r0 = pl.multiple_of(c * chunk_rows, chunk_rows)
        src = src_ref[pl.ds(r0, chunk_rows), :]
        lnk = lnk_ref[pl.ds(r0, chunk_rows), :]
        # `& 127` is a no-op for valid indices; it only sanitizes garbage read
        # from the padded tail of a ragged last block (results are discarded).
        si = src & lane_mask
        xi = (lnk + x_off) & lane_mask
        yi = (lnk + y_off) & lane_mask
        val = jnp.take_along_axis(tbl, si, axis=-1)     # nodes[src]
        dx = jnp.take_along_axis(tbl, xi, axis=-1)      # x[lnk]
        dy = jnp.take_along_axis(tbl, yi, axis=-1)      # y[lnk]
        out_ref[pl.ds(r0, chunk_rows), :] = dx + dy * val
        return carry

    lax.fori_loop(0, n_chunks, body, None, unroll=(n_chunks <= 16))


def _pick_block_rows(rows, requested):
    """Block rows: multiple of 8, capped so the grid keeps several steps."""
    br = max(8, (int(requested) // 8) * 8)
    if rows >= 32:
        cap = max(8, (rows // 4 // 8) * 8)     # >= ~4 grid steps (v7x megacore)
    else:
        cap = max(8, (rows // 2 // 8) * 8)
    return min(br, cap)


def _forward_pallas(src, lnk, nodes, x, y, block_rows):
    n = src.shape[0]
    node_num = nodes.shape[0]
    link_num = x.shape[0]
    x_off = node_num
    y_off = node_num + link_num

    # Pack nodes / x / y into a single zero-padded 128-lane table.
    tbl = jnp.zeros((_LANES,), jnp.float32)
    tbl = tbl.at[:node_num].set(nodes.astype(jnp.float32))
    tbl = tbl.at[x_off:x_off + link_num].set(x.astype(jnp.float32))
    tbl = tbl.at[y_off:y_off + link_num].set(y.astype(jnp.float32))
    tbl = tbl.reshape(1, _LANES)

    # Lane-dense 2-D presentation.  N % 128 == 0 -> zero-copy reshape; else
    # pad at most 127 index elements (padded index 0 is a valid target).
    n_pad = pl.cdiv(n, _LANES) * _LANES
    src_i = src.astype(jnp.int32)
    lnk_i = lnk.astype(jnp.int32)
    if n_pad != n:
        src_i = jnp.pad(src_i, (0, n_pad - n))
        lnk_i = jnp.pad(lnk_i, (0, n_pad - n))
    rows = n_pad // _LANES
    src2 = src_i.reshape(rows, _LANES)
    lnk2 = lnk_i.reshape(rows, _LANES)

    br = _pick_block_rows(rows, block_rows)
    grid = pl.cdiv(rows, br)                   # ragged last block handled by Pallas
    chunk = 32 if br % 32 == 0 else (16 if br % 16 == 0 else 8)

    idx_spec = pl.BlockSpec((br, _LANES), lambda i: (i, 0))
    tbl_spec = pl.BlockSpec((1, _LANES), lambda i: (0, 0))   # VMEM-resident

    out2 = pl.pallas_call(
        functools.partial(_embed_kernel, chunk_rows=chunk, x_off=x_off, y_off=y_off),
        out_shape=jax.ShapeDtypeStruct((rows, _LANES), jnp.float32),
        grid_spec=pltpu.PrefetchScalarGridSpec(
            num_scalar_prefetch=0,
            grid=(grid,),
            in_specs=[idx_spec, idx_spec, tbl_spec],
            out_specs=pl.BlockSpec((br, _LANES), lambda i: (i, 0)),
        ),
        compiler_params=pltpu.CompilerParams(
            dimension_semantics=("parallel",)),
    )(src2, lnk2, tbl)

    out = out2.reshape(n_pad)
    return out if n_pad == n else out[:n]


def embeding_forward(src, lnk, nodes, x, y, *, block_rows=512, min_pallas_n=32768):
    """out[i] = x[lnk[i]] + y[lnk[i]] * nodes[src[i]]  -> float32, shape (N,).

    block_rows: rows of 128 elements per grid step (multiple of 8).  512 is a
    good default; 1024-2048 can help at very large N.
    min_pallas_n: below this N the plain-XLA expression is used (Pallas launch
    overhead would dominate).
    """
    n = src.shape[0]
    node_num = nodes.shape[0]
    link_num = x.shape[0]
    if n < min_pallas_n or node_num + 2 * link_num > _LANES:
        # TODO(synk): tables wider than one packed 128-lane vreg would need a
        # lane-tiled gather; not needed for this module's sizes, so use XLA.
        nodes_f = nodes.astype(jnp.float32)
        x_f = x.astype(jnp.float32)
        y_f = y.astype(jnp.float32)
        return x_f[lnk] + y_f[lnk] * nodes_f[src]
    return _forward_pallas(src, lnk, nodes, x, y, block_rows)


if __name__ == "__main__":
    node_num = 64
    link_num = 32

    key = jax.random.PRNGKey(0)
    k_nodes, k_x, k_y = jax.random.split(key, 3)

    # Parameter init matching the PyTorch __init__:
    #   nodes ~ U[0,1);  x, y ~ 2*U[0,1) - 1
    nodes = jax.random.uniform(k_nodes, (node_num,), dtype=jnp.float32)
    x = 2.0 * jax.random.uniform(k_x, (link_num,), dtype=jnp.float32) - 1.0
    y = 2.0 * jax.random.uniform(k_y, (link_num,), dtype=jnp.float32) - 1.0

    # Two cases: N % 128 == 0 (zero-copy reshape path) and a ragged N.
    # min_pallas_n=0 forces the Pallas kernel even at these small demo sizes.
    for n_edges in (32768, 2000):
        k_src, k_lnk = jax.random.split(jax.random.fold_in(key, n_edges))
        src = jax.random.randint(k_src, (n_edges,), 0, node_num, dtype=jnp.int32)
        lnk = jax.random.randint(k_lnk, (n_edges,), 0, link_num, dtype=jnp.int32)

        out = embeding_forward(src, lnk, nodes, x, y,
                               block_rows=512, min_pallas_n=0)
        out = jax.block_until_ready(out)

        ref = x[lnk] + y[lnk] * nodes[src]
        assert out.shape == (n_edges,)
        assert jnp.allclose(out, ref, atol=1e-6, rtol=1e-6), \
            f"mismatch vs reference at N={n_edges}"

    print("KERNEL_OK")
</pallas_src>

<mosaic_0001>
module attributes {stable_mosaic.version = 11 : i64} {
  func.func @_embed_kernel(%arg0: i32, %arg1: memref<64x128xi32, #tpu.memory_space<vmem>>, %arg2: memref<64x128xi32, #tpu.memory_space<vmem>>, %arg3: memref<1x128xf32, #tpu.memory_space<vmem>>, %arg4: memref<64x128xf32, #tpu.memory_space<vmem>>) attributes {dimension_semantics = [#tpu.dimension_semantics<parallel>], iteration_bounds = array<i64: 4>, scalar_prefetch = 0 : i64, scratch_operands = 0 : i64, tpu.core_type = #tpu.core_type<tc>, window_params = [{transform_indices = @transform_0, window_bounds = array<i64: 64, 128>}, {transform_indices = @transform_1, window_bounds = array<i64: 64, 128>}, {pipeline_mode = #tpu.pipeline_mode<synchronous>, transform_indices = @transform_2, window_bounds = array<i64: 1, 128>}, {transform_indices = @transform_3, window_bounds = array<i64: 64, 128>}]} {
    %c0 = arith.constant 0 : index
    %c0_0 = arith.constant 0 : index
    %0 = vector.load %arg3[%c0, %c0_0] : memref<1x128xf32, #tpu.memory_space<vmem>>, vector<1x128xf32>
    %1 = vector.shape_cast %0 : vector<1x128xf32> to vector<1x128xf32>
    %2 = vector.broadcast %1 : vector<1x128xf32> to vector<32x128xf32>
    %c0_i32 = arith.constant 0 : i32
    %c32_i32 = arith.constant 32 : i32
    %3 = arith.muli %c0_i32, %c32_i32 : i32
    %4 = tpu.assume_multiple %3, 32 : i32
    %5 = arith.index_cast %4 : i32 to index
    %c0_1 = arith.constant 0 : index
    %6 = vector.load %arg1[%5, %c0_1] : memref<64x128xi32, #tpu.memory_space<vmem>>, vector<32x128xi32>
    %7 = arith.index_cast %4 : i32 to index
    %c0_2 = arith.constant 0 : index
    %8 = vector.load %arg2[%7, %c0_2] : memref<64x128xi32, #tpu.memory_space<vmem>>, vector<32x128xi32>
    %c127_i32 = arith.constant 127 : i32
    %9 = vector.broadcast %c127_i32 : i32 to vector<32x128xi32>
    %10 = arith.andi %6, %9 : vector<32x128xi32>
    %c64_i32 = arith.constant 64 : i32
    %11 = vector.broadcast %c64_i32 : i32 to vector<32x128xi32>
    %12 = arith.addi %8, %11 : vector<32x128xi32>
    %c127_i32_3 = arith.constant 127 : i32
    %13 = vector.broadcast %c127_i32_3 : i32 to vector<32x128xi32>
    %14 = arith.andi %12, %13 : vector<32x128xi32>
    %c96_i32 = arith.constant 96 : i32
    %15 = vector.broadcast %c96_i32 : i32 to vector<32x128xi32>
    %16 = arith.addi %8, %15 : vector<32x128xi32>
    %c127_i32_4 = arith.constant 127 : i32
    %17 = vector.broadcast %c127_i32_4 : i32 to vector<32x128xi32>
    %18 = arith.andi %16, %17 : vector<32x128xi32>
    %c0_i32_5 = arith.constant 0 : i32
    %19 = vector.broadcast %c0_i32_5 : i32 to vector<32x128xi32>
    %20 = arith.cmpi slt, %10, %19 : vector<32x128xi32>
    %c128_i32 = arith.constant 128 : i32
    %21 = vector.broadcast %c128_i32 : i32 to vector<32x128xi32>
    %22 = arith.addi %10, %21 : vector<32x128xi32>
    %23 = arith.select %20, %22, %10 : vector<32x128xi1>, vector<32x128xi32>
    %24 = vector.shape_cast %23 : vector<32x128xi32> to vector<32x128x1xi32>
    %25 = vector.shape_cast %24 : vector<32x128x1xi32> to vector<32x128xi32>
    %26 = tpu.dynamic_gather %2[%25] in [1] : vector<32x128xf32>, vector<32x128xi32> -> vector<32x128xf32>
    %c0_i32_6 = arith.constant 0 : i32
    %27 = vector.broadcast %c0_i32_6 : i32 to vector<32x128xi32>
    %28 = arith.cmpi slt, %14, %27 : vector<32x128xi32>
    %c128_i32_7 = arith.constant 128 : i32
    %29 = vector.broadcast %c128_i32_7 : i32 to vector<32x128xi32>
    %30 = arith.addi %14, %29 : vector<32x128xi32>
    %31 = arith.select %28, %30, %14 : vector<32x128xi1>, vector<32x128xi32>
    %32 = vector.shape_cast %31 : vector<32x128xi32> to vector<32x128x1xi32>
    %33 = vector.shape_cast %32 : vector<32x128x1xi32> to vector<32x128xi32>
    %34 = tpu.dynamic_gather %2[%33] in [1] : vector<32x128xf32>, vector<32x128xi32> -> vector<32x128xf32>
    %c0_i32_8 = arith.constant 0 : i32
    %35 = vector.broadcast %c0_i32_8 : i32 to vector<32x128xi32>
    %36 = arith.cmpi slt, %18, %35 : vector<32x128xi32>
    %c128_i32_9 = arith.constant 128 : i32
    %37 = vector.broadcast %c128_i32_9 : i32 to vector<32x128xi32>
    %38 = arith.addi %18, %37 : vector<32x128xi32>
    %39 = arith.select %36, %38, %18 : vector<32x128xi1>, vector<32x128xi32>
    %40 = vector.shape_cast %39 : vector<32x128xi32> to vector<32x128x1xi32>
    %41 = vector.shape_cast %40 : vector<32x128x1xi32> to vector<32x128xi32>
    %42 = tpu.dynamic_gather %2[%41] in [1] : vector<32x128xf32>, vector<32x128xi32> -> vector<32x128xf32>
    %43 = arith.mulf %42, %26 : vector<32x128xf32>
    %44 = arith.addf %34, %43 : vector<32x128xf32>
    %45 = arith.index_cast %4 : i32 to index
    %c0_10 = arith.constant 0 : index
    %46 = vector.load %arg4[%45, %c0_10] : memref<64x128xf32, #tpu.memory_space<vmem>>, vector<32x128xf32>
    tpu.vector_store %arg4[%45, %c0_10], %44 {strides = array<i32>} : memref<64x128xf32, #tpu.memory_space<vmem>>, vector<32x128xf32>,
    %c1_i32 = arith.constant 1 : i32
    %c32_i32_11 = arith.constant 32 : i32
    %47 = arith.muli %c1_i32, %c32_i32_11 : i32
    %48 = tpu.assume_multiple %47, 32 : i32
    %49 = arith.index_cast %48 : i32 to index
    %c0_12 = arith.constant 0 : index
    %50 = vector.load %arg1[%49, %c0_12] : memref<64x128xi32, #tpu.memory_space<vmem>>, vector<32x128xi32>
    %51 = arith.index_cast %48 : i32 to index
    %c0_13 = arith.constant 0 : index
    %52 = vector.load %arg2[%51, %c0_13] : memref<64x128xi32, #tpu.memory_space<vmem>>, vector<32x128xi32>
    %c127_i32_14 = arith.constant 127 : i32
    %53 = vector.broadcast %c127_i32_14 : i32 to vector<32x128xi32>
    %54 = arith.andi %50, %53 : vector<32x128xi32>
    %c64_i32_15 = arith.constant 64 : i32
    %55 = vector.broadcast %c64_i32_15 : i32 to vector<32x128xi32>
    %56 = arith.addi %52, %55 : vector<32x128xi32>
    %c127_i32_16 = arith.constant 127 : i32
    %57 = vector.broadcast %c127_i32_16 : i32 to vector<32x128xi32>
    %58 = arith.andi %56, %57 : vector<32x128xi32>
    %c96_i32_17 = arith.constant 96 : i32
    %59 = vector.broadcast %c96_i32_17 : i32 to vector<32x128xi32>
    %60 = arith.addi %52, %59 : vector<32x128xi32>
    %c127_i32_18 = arith.constant 127 : i32
    %61 = vector.broadcast %c127_i32_18 : i32 to vector<32x128xi32>
    %62 = arith.andi %60, %61 : vector<32x128xi32>
    %c0_i32_19 = arith.constant 0 : i32
    %63 = vector.broadcast %c0_i32_19 : i32 to vector<32x128xi32>
    %64 = arith.cmpi slt, %54, %63 : vector<32x128xi32>
    %c128_i32_20 = arith.constant 128 : i32
    %65 = vector.broadcast %c128_i32_20 : i32 to vector<32x128xi32>
    %66 = arith.addi %54, %65 : vector<32x128xi32>
    %67 = arith.select %64, %66, %54 : vector<32x128xi1>, vector<32x128xi32>
    %68 = vector.shape_cast %67 : vector<32x128xi32> to vector<32x128x1xi32>
    %69 = vector.shape_cast %68 : vector<32x128x1xi32> to vector<32x128xi32>
    %70 = tpu.dynamic_gather %2[%69] in [1] : vector<32x128xf32>, vector<32x128xi32> -> vector<32x128xf32>
    %c0_i32_21 = arith.constant 0 : i32
    %71 = vector.broadcast %c0_i32_21 : i32 to vector<32x128xi32>
    %72 = arith.cmpi slt, %58, %71 : vector<32x128xi32>
    %c128_i32_22 = arith.constant 128 : i32
    %73 = vector.broadcast %c128_i32_22 : i32 to vector<32x128xi32>
    %74 = arith.addi %58, %73 : vector<32x128xi32>
    %75 = arith.select %72, %74, %58 : vector<32x128xi1>, vector<32x128xi32>
    %76 = vector.shape_cast %75 : vector<32x128xi32> to vector<32x128x1xi32>
    %77 = vector.shape_cast %76 : vector<32x128x1xi32> to vector<32x128xi32>
    %78 = tpu.dynamic_gather %2[%77] in [1] : vector<32x128xf32>, vector<32x128xi32> -> vector<32x128xf32>
    %c0_i32_23 = arith.constant 0 : i32
    %79 = vector.broadcast %c0_i32_23 : i32 to vector<32x128xi32>
    %80 = arith.cmpi slt, %62, %79 : vector<32x128xi32>
    %c128_i32_24 = arith.constant 128 : i32
    %81 = vector.broadcast %c128_i32_24 : i32 to vector<32x128xi32>
    %82 = arith.addi %62, %81 : vector<32x128xi32>
    %83 = arith.select %80, %82, %62 : vector<32x128xi1>, vector<32x128xi32>
    %84 = vector.shape_cast %83 : vector<32x128xi32> to vector<32x128x1xi32>
    %85 = vector.shape_cast %84 : vector<32x128x1xi32> to vector<32x128xi32>
    %86 = tpu.dynamic_gather %2[%85] in [1] : vector<32x128xf32>, vector<32x128xi32> -> vector<32x128xf32>
    %87 = arith.mulf %86, %70 : vector<32x128xf32>
    %88 = arith.addf %78, %87 : vector<32x128xf32>
    %89 = arith.index_cast %48 : i32 to index
    %c0_25 = arith.constant 0 : index
    %90 = vector.load %arg4[%89, %c0_25] : memref<64x128xf32, #tpu.memory_space<vmem>>, vector<32x128xf32>
    tpu.vector_store %arg4[%89, %c0_25], %88 {strides = array<i32>} : memref<64x128xf32, #tpu.memory_space<vmem>>, vector<32x128xf32>,
    %c2_i32 = arith.constant 2 : i32
    return
  }
  func.func @transform_0(%arg0: i32) -> (i32, i32) {
    %c0_i32 = arith.constant 0 : i32
    %c0_i32_0 = arith.constant 0 : i32
    return %arg0, %c0_i32 : i32, i32
  }
  func.func @transform_1(%arg0: i32) -> (i32, i32) {
    %c0_i32 = arith.constant 0 : i32
    %c0_i32_0 = arith.constant 0 : i32
    return %arg0, %c0_i32 : i32, i32
  }
  func.func @transform_2(%arg0: i32) -> (i32, i32) {
    %c0_i32 = arith.constant 0 : i32
    %c0_i32_0 = arith.constant 0 : i32
    %c0_i32_1 = arith.constant 0 : i32
    return %c0_i32, %c0_i32_0 : i32, i32
  }
  func.func @transform_3(%arg0: i32) -> (i32, i32) {
    %c0_i32 = arith.constant 0 : i32
    %c0_i32_0 = arith.constant 0 : i32
    return %arg0, %c0_i32 : i32, i32
  }
}

</mosaic_0001>

<llo_original>
// kernel: tpu_custom_call.1
$region0: #{tpu_custom_call.1}
  #allocation0 [shape = 'u32[]', space=smem, size = 0x4, offset = 0x4, fixed_abs, tag = 'smem constant byte address 0x4 - core index']
  #allocation1 [shape = 'u32[144,128]{1,0:T(1,128)}', space=vmem, size = 0x12000, scoped, tag = 'internal scratch']
  %s0 = inlined_call_operand.hbm [shape: s32[256,128], index: 0, kind: input, shape index: {}]
  %s1 = inlined_call_operand.hbm [shape: s32[256,128], index: 1, kind: input, shape index: {}]
  %s2 = inlined_call_operand.vmem [shape: f32[1,128], index: 2, kind: input, shape index: {}]
  %s3 = inlined_call_operand.hbm [shape: f32[256,128], index: 3, kind: output, shape index: {}]
  %s4 = sld [smem:[#allocation0]]
  $region53: #{tpu_custom_call.1} parent=0
    _
  %s6 = ssub.s32 1, %s4
  %s7 = scalar_select 0, %s6, %s4
  $region1: #{tpu_custom_call.1} parent=0
    #allocation2 [shape = 'u8[65536]{0}', space=vmem, size = 0x10000, scoped, tag = 'input window, operand 0']
    #allocation3 [shape = 's32[2]{0}', space=sflag, size = 0x8, scoped, tag = 'scoped memory for tpu_custom_call.1']
    #allocation4 [shape = 's32[2]{0}', space=sflag, size = 0x8, scoped, tag = 'scoped memory for tpu_custom_call.1']
    #allocation5 [shape = 'u8[65536]{0}', space=vmem, size = 0x10000, scoped, tag = 'input window, operand 1']
    #allocation6 [shape = 's32[2]{0}', space=sflag, size = 0x8, scoped, tag = 'scoped memory for tpu_custom_call.1']
    #allocation7 [shape = 'u8[65536]{0}', space=vmem, size = 0x10000, scoped, tag = 'output window, operand 0']
    %8 = vsyncpa [#allocation3], 0
    %s9 = scalar_lea.sflag [#allocation3], 1
    %10 = vsyncpa %s9, 0
    %11 = vsyncpa [#allocation6], 0
    %s12 = scalar_lea.sflag [#allocation6], 1
    %13 = vsyncpa %s12, 0
    %14 = vsyncpa [#allocation4], 0
    %s15 = scalar_lea.sflag [#allocation4], 1
    %16 = vsyncpa %s15, 0
    loop: start=0, step=1, limit=6
    $region2: #{tpu_custom_call.1} parent=1 // loop_pre_header
      _
    $region3: #{tpu_custom_call.1} parent=1 // loop_header
      %s18 = sphi 0, %s22
      %p19 = scmp.ge.s32.totalorder %s18, 6
      %s28 = sphi 0, %s30
      %s31 = sphi 0, %s28
      %s32 = sphi 0, %s31
      %s48 = sphi 0, %s32
      %s54 = sphi 0, %s56
      %s57 = sphi 0, %s54
      %s58 = sphi 0, %s57
      %s74 = sphi 0, %s58
      %s78 = sphi 0, %s78
      %s80 = sphi 0, %s78
      %s81 = sphi 0, %s80
      %s95 = sphi 0, %s81
      %s101 = sphi 0, %s103
      %s104 = sphi 0, %s101
      %s105 = sphi 0, %s104
      %s121 = sphi 0, %s105
    $region4: #{tpu_custom_call.1} parent=1 // loop_header_branch
      %21 = sbr.rel (%p19) target = $region8
    $region5: #{tpu_custom_call.1} parent=1 // loop_body
      %s23 = ssub.s32 %s18, 1
      %s24 = ssub.s32 %s18, 2
      %s25 = sadd.s32 %s18, 1
      %s26 = ssub.s32 %s18, %s25
      %p27 = scmp.eq.s32.totalorder %s26, 0
      %s29 = sadd.s32 %s28, 1
      %s30 = scalar_select %p27, %s28, %s29
      %p33 = pneg %p27
      %p34 = scmp.eq.s32.totalorder %s18, 3
      %p35 = por %p33, %p34
      %p36 = scmp.ne.s32.totalorder %s28, %s31
      %p37 = scmp.eq.s32.totalorder %s18, 0
      %p38 = por %p36, %p37
      %p39 = scmp.ne.s32.totalorder %s28, %s31
      %p40 = scmp.eq.s32.totalorder %s23, 3
      %p41 = por %p39, %p40
      %p42 = scmp.ne.s32.totalorder %s31, %s32
      %p43 = scmp.eq.s32.totalorder %s23, 0
      %p44 = por %p42, %p43
      %p45 = scmp.ne.s32.totalorder %s31, %s32
      %p46 = scmp.eq.s32.totalorder %s24, 3
      %p47 = por %p45, %p46
      %p49 = scmp.ne.s32.totalorder %s32, %s48
      %p50 = scmp.eq.s32.totalorder %s24, 0
      %p51 = por %p49, %p50
      %s52 = ssub.s32 %s18, %s25
      %p53 = scmp.eq.s32.totalorder %s52, 0
      %s55 = sadd.s32 %s54, 1
      %s56 = scalar_select %p53, %s54, %s55
      %p59 = pneg %p53
      %p60 = scmp.eq.s32.totalorder %s18, 3
      %p61 = por %p59, %p60
      %p62 = scmp.ne.s32.totalorder %s54, %s57
      %p63 = scmp.eq.s32.totalorder %s18, 0
      %p64 = por %p62, %p63
      %p65 = scmp.ne.s32.totalorder %s54, %s57
      %p66 = scmp.eq.s32.totalorder %s23, 3
      %p67 = por %p65, %p66
      %p68 = scmp.ne.s32.totalorder %s57, %s58
      %p69 = scmp.eq.s32.totalorder %s23, 0
      %p70 = por %p68, %p69
      %p71 = scmp.ne.s32.totalorder %s57, %s58
      %p72 = scmp.eq.s32.totalorder %s24, 3
      %p73 = por %p71, %p72
      %p75 = scmp.ne.s32.totalorder %s58, %s74
      %p76 = scmp.eq.s32.totalorder %s24, 0
      %p77 = por %p75, %p76
      %s79 = sadd.s32 %s78, 1
      %p82 = scmp.eq.s32.totalorder %s18, 3
      %p83 = scmp.ne.s32.totalorder %s78, %s80
      %p84 = scmp.eq.s32.totalorder %s18, 0
      %p85 = por %p83, %p84
      %p86 = scmp.ne.s32.totalorder %s78, %s80
      %p87 = scmp.eq.s32.totalorder %s23, 3
      %p88 = por %p86, %p87
      %p89 = scmp.ne.s32.totalorder %s80, %s81
      %p90 = scmp.eq.s32.totalorder %s23, 0
      %p91 = por %p89, %p90
      %p92 = scmp.ne.s32.totalorder %s80, %s81
      %p93 = scmp.eq.s32.totalorder %s24, 3
      %p94 = por %p92, %p93
      %p96 = scmp.ne.s32.totalorder %s81, %s95
      %p97 = scmp.eq.s32.totalorder %s24, 0
      %p98 = por %p96, %p97
      %s99 = ssub.s32 %s18, %s25
      %p100 = scmp.eq.s32.totalorder %s99, 0
      %s102 = sadd.s32 %s101, 1
      %s103 = scalar_select %p100, %s101, %s102
      %p106 = pneg %p100
      %p107 = scmp.eq.s32.totalorder %s18, 3
      %p108 = por %p106, %p107
      %p109 = scmp.ne.s32.totalorder %s101, %s104
      %p110 = scmp.eq.s32.totalorder %s18, 0
      %p111 = por %p109, %p110
      %p112 = scmp.ne.s32.totalorder %s101, %s104
      %p113 = scmp.eq.s32.totalorder %s23, 3
      %p114 = por %p112, %p113
      %p115 = scmp.ne.s32.totalorder %s104, %s105
      %p116 = scmp.eq.s32.totalorder %s23, 0
      %p117 = por %p115, %p116
      %p118 = scmp.ne.s32.totalorder %s104, %s105
      %p119 = scmp.eq.s32.totalorder %s24, 3
      %p120 = por %p118, %p119
      %p122 = scmp.ne.s32.totalorder %s105, %s121
      %p123 = scmp.eq.s32.totalorder %s24, 0
      %p124 = por %p122, %p123
      %p125 = scmp.le.s32.totalorder 1, %s18
      %p126 = scmp.lt.s32.totalorder %s18, 5
      %p127 = pnand %p125, %p126
      %p128 = pneg %p127
      // Predicated region
      $region9: #{tpu_custom_call.1} parent=5 // pred_check
        _
      $region10: #{tpu_custom_call.1} parent=5 // pred_check_branch
        %130 = sbr.rel (%p127) target = $region12
      $region11: #{tpu_custom_call.1} parent=5 // pred_region
        %s131 = ssub.s32 %s18, 1
        // Predicated region
        $region13: #{tpu_custom_call.1} parent=11 // pred_check
          %p132 = pneg %p91
        $region14: #{tpu_custom_call.1} parent=11 // pred_check_branch
          %134 = sbr.rel (%p132) target = $region16
        $region15: #{tpu_custom_call.1} parent=11 // pred_region
          _
        $region16: #{tpu_custom_call.1} parent=11 // pred_fallthru
          _
      $region12: #{tpu_custom_call.1} parent=5 // pred_fallthru
        _
      %p135 = scmp.lt.s32.totalorder %s18, 4
      // Predicated region
      $region17: #{tpu_custom_call.1} parent=5 // pred_check
        %p136 = pneg %p135
      $region18: #{tpu_custom_call.1} parent=5 // pred_check_branch
        %138 = sbr.rel (%p136) target = $region20
      $region19: #{tpu_custom_call.1} parent=5 // pred_region
        // Predicated region
        $region21: #{tpu_custom_call.1} parent=19 // pred_check
          %p139 = pneg %p38
        $region22: #{tpu_custom_call.1} parent=19 // pred_check_branch
          %141 = sbr.rel (%p139) target = $region24
        $region23: #{tpu_custom_call.1} parent=19 // pred_region
          %s142 = sand.u32 %s28, 1
          %s143 = scalar_lea.sflag [#allocation3], %s142
          %s144 = sand.u32 %s28, 1
          %s145 = smul.addr %s144, 64
          %s146 = scalar_lea.vmem [#allocation2], %s145
          %s147 = smul.u32 8, %s18
          %s149 = ssub.s32 1024, 1024
          %150 = vsyncadd %s143, %s149
          %s151 = smul.addr %s147, 128
          %s152 = scalar_lea.hbm %s0, %s151
          %s153 = sshll.u32 %s146, 4
          %s154 = int_to_ptr.vmem [resolvable:$true] %s153
          %159 = dma.hbm_to_vmem [thread:$0]  %s152, 1024, %s154, %s143, 128, 128, 8
        $region24: #{tpu_custom_call.1} parent=19 // pred_fallthru
          _
        // Predicated region
        $region25: #{tpu_custom_call.1} parent=19 // pred_check
          %p160 = pneg %p64
        $region26: #{tpu_custom_call.1} parent=19 // pred_check_branch
          %162 = sbr.rel (%p160) target = $region28
        $region27: #{tpu_custom_call.1} parent=19 // pred_region
          %s163 = sand.u32 %s54, 1
          %s164 = scalar_lea.sflag [#allocation6], %s163
          %s165 = sand.u32 %s54, 1
          %s166 = smul.addr %s165, 64
          %s167 = scalar_lea.vmem [#allocation5], %s166
          %s168 = smul.u32 8, %s18
          %s170 = ssub.s32 1024, 1024
          %171 = vsyncadd %s164, %s170
          %s172 = smul.addr %s168, 128
          %s173 = scalar_lea.hbm %s1, %s172
          %s174 = sshll.u32 %s167, 4
          %s175 = int_to_ptr.vmem [resolvable:$true] %s174
          %180 = dma.hbm_to_vmem [thread:$0]  %s173, 1024, %s175, %s164, 128, 128, 8
        $region28: #{tpu_custom_call.1} parent=19 // pred_fallthru
          _
      $region20: #{tpu_custom_call.1} parent=5 // pred_fallthru
        _
      %p181 = scmp.le.s32.totalorder 1, %s18
      %p182 = scmp.lt.s32.totalorder %s18, 5
      %p183 = pnand %p181, %p182
      %p184 = pneg %p183
      // Predicated region
      $region29: #{tpu_custom_call.1} parent=5 // pred_check
        _
      $region30: #{tpu_custom_call.1} parent=5 // pred_check_branch
        %186 = sbr.rel (%p183) target = $region32
      $region31: #{tpu_custom_call.1} parent=5 // pred_region
        %s187 = ssub.s32 %s18, 1
        %s188 = sand.u32 %s31, 1
        %s189 = scalar_lea.sflag [#allocation3], %s188
        %s190 = sand.u32 %s31, 1
        %s191 = smul.addr %s190, 64
        %s192 = scalar_lea.vmem [#allocation2], %s191
        // Predicated region
        $region33: #{tpu_custom_call.1} parent=31 // pred_check
          %p193 = pneg %p44
        $region34: #{tpu_custom_call.1} parent=31 // pred_check_branch
          %195 = sbr.rel (%p193) target = $region36
        $region35: #{tpu_custom_call.1} parent=31 // pred_region
          %196 = dma.done %s189, 1024
        $region36: #{tpu_custom_call.1} parent=31 // pred_fallthru
          _
        %s197 = sand.u32 %s57, 1
        %s198 = scalar_lea.sflag [#allocation6], %s197
        %s199 = sand.u32 %s57, 1
        %s200 = smul.addr %s199, 64
        %s201 = scalar_lea.vmem [#allocation5], %s200
        // Predicated region
        $region37: #{tpu_custom_call.1} parent=31 // pred_check
          %p202 = pneg %p70
        $region38: #{tpu_custom_call.1} parent=31 // pred_check_branch
          %204 = sbr.rel (%p202) target = $region40
        $region39: #{tpu_custom_call.1} parent=31 // pred_region
          %205 = dma.done %s198, 1024
        $region40: #{tpu_custom_call.1} parent=31 // pred_fallthru
          _
        %s206 = sand.u32 %s31, 1
        %s207 = scalar_lea.sflag [#allocation3], %s206
        %s208 = sand.u32 %s31, 1
        %s209 = smul.addr %s208, 64
        %s210 = scalar_lea.vmem [#allocation2], %s209
        %p211 = pneg %p44
        %p212 = pneg %p41
        %s213 = sand.u32 %s57, 1
        %s214 = scalar_lea.sflag [#allocation6], %s213
        %s215 = sand.u32 %s57, 1
        %s216 = smul.addr %s215, 64
        %s217 = scalar_lea.vmem [#allocation5], %s216
        %p218 = pneg %p70
        %p219 = pneg %p67
        %p220 = pneg %p91
        %p221 = pneg %p88
        %p222 = pneg %p117
        %p223 = pneg %p114
        %s224 = sand.u32 %s104, 1
        %s225 = scalar_lea.sflag [#allocation4], %s224
        %s226 = sand.u32 %s104, 1
        %s227 = smul.addr %s226, 64
        %s228 = scalar_lea.vmem [#allocation7], %s227
        %s229 = smul.u32 8, %s23
        %s230 = smul.u32 8, %s23
        %s231 = smul.u32 8, %s23
        %v232 = vld [vmem:[%s2] sm:$0x1]
        %v234 = vlaneseq
        %v235 = vshrl.u32 %v234, 7
        %v236 = vsub.s32 0, %v235
        %v237 = vrot.slane %v232, %v236
        %v239 = vld [vmem:[%s192] sm:$0xff]
        %v240 = vld [vmem:[%s192 + $0x8] sm:$0xff]
        %v241 = vld [vmem:[%s192 + $0x10] sm:$0xff]
        %v242 = vld [vmem:[%s192 + $0x18] sm:$0xff]
        %v243 = vld [vmem:[%s201] sm:$0xff]
        %v244 = vld [vmem:[%s201 + $0x8] sm:$0xff]
        %v245 = vld [vmem:[%s201 + $0x10] sm:$0xff]
        %v246 = vld [vmem:[%s201 + $0x18] sm:$0xff]
        %v247 = vand.u32 %v239, 127
        %v248 = vand.u32 %v240, 127
        %v249 = vand.u32 %v241, 127
        %v250 = vand.u32 %v242, 127
        %v251 = vadd.s32 %v243, 64
        %v252 = vadd.s32 %v244, 64
        %v253 = vadd.s32 %v245, 64
        %v254 = vadd.s32 %v246, 64
        %v255 = vand.u32 %v251, 127
        %v256 = vand.u32 %v252, 127
        %v257 = vand.u32 %v253, 127
        %v258 = vand.u32 %v254, 127
        %v259 = vadd.s32 %v243, 96
        %v260 = vadd.s32 %v244, 96
        %v261 = vadd.s32 %v245, 96
        %v262 = vadd.s32 %v246, 96
        %v263 = vand.u32 %v259, 127
        %v264 = vand.u32 %v260, 127
        %v265 = vand.u32 %v261, 127
        %v266 = vand.u32 %v262, 127
        %vm267 = vcmp.lt.s32.totalorder %v247, 0
        %vm268 = vcmp.lt.s32.totalorder %v248, 0
        %vm269 = vcmp.lt.s32.totalorder %v249, 0
        %vm270 = vcmp.lt.s32.totalorder %v250, 0
        %v271 = vadd.s32 %v247, 128
        %v272 = vadd.s32 %v248, 128
        %v273 = vadd.s32 %v249, 128
        %v274 = vadd.s32 %v250, 128
        %v275 = vsel %vm267, %v271, %v247
        %v276 = vsel %vm268, %v272, %v248
        %v277 = vsel %vm269, %v273, %v249
        %v278 = vsel %vm270, %v274, %v250
        %279 = vset.pattern.permute.xlu0 %v275
        %280 = vperm.xlu0 %279, %v237
        %v281 = vpop.permute.xlu0 %280
        %282 = vset.pattern.permute.xlu0 %v276
        %283 = vperm.xlu0 %282, %v237
        %v284 = vpop.permute.xlu0 %283
        %285 = vset.pattern.permute.xlu0 %v277
        %286 = vperm.xlu0 %285, %v237
        %v287 = vpop.permute.xlu0 %286
        %288 = vset.pattern.permute.xlu0 %v278
        %289 = vperm.xlu0 %288, %v237
        %v290 = vpop.permute.xlu0 %289
        %vm291 = vcmp.lt.s32.totalorder %v255, 0
        %vm292 = vcmp.lt.s32.totalorder %v256, 0
        %vm293 = vcmp.lt.s32.totalorder %v257, 0
        %vm294 = vcmp.lt.s32.totalorder %v258, 0
        %v295 = vadd.s32 %v255, 128
        %v296 = vadd.s32 %v256, 128
        %v297 = vadd.s32 %v257, 128
        %v298 = vadd.s32 %v258, 128
        %v299 = vsel %vm291, %v295, %v255
        %v300 = vsel %vm292, %v296, %v256
        %v301 = vsel %vm293, %v297, %v257
        %v302 = vsel %vm294, %v298, %v258
        %303 = vset.pattern.permute.xlu0 %v299
        %304 = vperm.xlu0 %303, %v237
        %v305 = vpop.permute.xlu0 %304
        %306 = vset.pattern.permute.xlu0 %v300
        %307 = vperm.xlu0 %306, %v237
        %v308 = vpop.permute.xlu0 %307
        %309 = vset.pattern.permute.xlu0 %v301
        %310 = vperm.xlu0 %309, %v237
        %v311 = vpop.permute.xlu0 %310
        %312 = vset.pattern.permute.xlu0 %v302
        %313 = vperm.xlu0 %312, %v237
        %v314 = vpop.permute.xlu0 %313
        %vm315 = vcmp.lt.s32.totalorder %v263, 0
        %vm316 = vcmp.lt.s32.totalorder %v264, 0
        %vm317 = vcmp.lt.s32.totalorder %v265, 0
        %vm318 = vcmp.lt.s32.totalorder %v266, 0
        %v319 = vadd.s32 %v263, 128
        %v320 = vadd.s32 %v264, 128
        %v321 = vadd.s32 %v265, 128
        %v322 = vadd.s32 %v266, 128
        %v323 = vsel %vm315, %v319, %v263
        %v324 = vsel %vm316, %v320, %v264
        %v325 = vsel %vm317, %v321, %v265
        %v326 = vsel %vm318, %v322, %v266
        %327 = vset.pattern.permute.xlu0 %v323
        %328 = vperm.xlu0 %327, %v237
        %v329 = vpop.permute.xlu0 %328
        %330 = vset.pattern.permute.xlu0 %v324
        %331 = vperm.xlu0 %330, %v237
        %v332 = vpop.permute.xlu0 %331
        %333 = vset.pattern.permute.xlu0 %v325
        %334 = vperm.xlu0 %333, %v237
        %v335 = vpop.permute.xlu0 %334
        %336 = vset.pattern.permute.xlu0 %v326
        %337 = vperm.xlu0 %336, %v237
        %v338 = vpop.permute.xlu0 %337
        %v339 = vmul.f32 %v329, %v281
        %v340 = vmul.f32 %v332, %v284
        %v341 = vmul.f32 %v335, %v287
        %v342 = vmul.f32 %v338, %v290
        %v343 = vadd.f32 %v305, %v339
        %v344 = vadd.f32 %v308, %v340
        %v345 = vadd.f32 %v311, %v341
        %v346 = vadd.f32 %v314, %v342
        %347 = vst [vmem:[%s228] sm:$0xff] %v343
        %348 = vst [vmem:[%s228 + $0x8] sm:$0xff] %v344
        %349 = vst [vmem:[%s228 + $0x10] sm:$0xff] %v345
        %350 = vst [vmem:[%s228 + $0x18] sm:$0xff] %v346
        %s351 = scalar_lea.vmem %s192, 32 [#allocation2]
        %v352 = vld [vmem:[%s351] sm:$0xff]
        %v353 = vld [vmem:[%s351 + $0x8] sm:$0xff]
        %v354 = vld [vmem:[%s351 + $0x10] sm:$0xff]
        %v355 = vld [vmem:[%s351 + $0x18] sm:$0xff]
        %s356 = scalar_lea.vmem %s201, 32 [#allocation5]
        %v357 = vld [vmem:[%s356] sm:$0xff]
        %v358 = vld [vmem:[%s356 + $0x8] sm:$0xff]
        %v359 = vld [vmem:[%s356 + $0x10] sm:$0xff]
        %v360 = vld [vmem:[%s356 + $0x18] sm:$0xff]
        %v361 = vand.u32 %v352, 127
        %v362 = vand.u32 %v353, 127
        %v363 = vand.u32 %v354, 127
        %v364 = vand.u32 %v355, 127
        %v365 = vadd.s32 %v357, 64
        %v366 = vadd.s32 %v358, 64
        %v367 = vadd.s32 %v359, 64
        %v368 = vadd.s32 %v360, 64
        %v369 = vand.u32 %v365, 127
        %v370 = vand.u32 %v366, 127
        %v371 = vand.u32 %v367, 127
        %v372 = vand.u32 %v368, 127
        %v373 = vadd.s32 %v357, 96
        %v374 = vadd.s32 %v358, 96
        %v375 = vadd.s32 %v359, 96
        %v376 = vadd.s32 %v360, 96
        %v377 = vand.u32 %v373, 127
        %v378 = vand.u32 %v374, 127
        %v379 = vand.u32 %v375, 127
        %v380 = vand.u32 %v376, 127
        %vm381 = vcmp.lt.s32.totalorder %v361, 0
        %vm382 = vcmp.lt.s32.totalorder %v362, 0
        %vm383 = vcmp.lt.s32.totalorder %v363, 0
        %vm384 = vcmp.lt.s32.totalorder %v364, 0
        %v385 = vadd.s32 %v361, 128
        %v386 = vadd.s32 %v362, 128
        %v387 = vadd.s32 %v363, 128
        %v388 = vadd.s32 %v364, 128
        %v389 = vsel %vm381, %v385, %v361
        %v390 = vsel %vm382, %v386, %v362
        %v391 = vsel %vm383, %v387, %v363
        %v392 = vsel %vm384, %v388, %v364
        %393 = vset.pattern.permute.xlu0 %v389
        %394 = vperm.xlu0 %393, %v237
        %v395 = vpop.permute.xlu0 %394
        %396 = vset.pattern.permute.xlu0 %v390
        %397 = vperm.xlu0 %396, %v237
        %v398 = vpop.permute.xlu0 %397
        %399 = vset.pattern.permute.xlu0 %v391
        %400 = vperm.xlu0 %399, %v237
        %v401 = vpop.permute.xlu0 %400
        %402 = vset.pattern.permute.xlu0 %v392
        %403 = vperm.xlu0 %402, %v237
        %v404 = vpop.permute.xlu0 %403
        %vm405 = vcmp.lt.s32.totalorder %v369, 0
        %vm406 = vcmp.lt.s32.totalorder %v370, 0
        %vm407 = vcmp.lt.s32.totalorder %v371, 0
        %vm408 = vcmp.lt.s32.totalorder %v372, 0
        %v409 = vadd.s32 %v369, 128
        %v410 = vadd.s32 %v370, 128
        %v411 = vadd.s32 %v371, 128
        %v412 = vadd.s32 %v372, 128
        %v413 = vsel %vm405, %v409, %v369
        %v414 = vsel %vm406, %v410, %v370
        %v415 = vsel %vm407, %v411, %v371
        %v416 = vsel %vm408, %v412, %v372
        %417 = vset.pattern.permute.xlu0 %v413
        %418 = vperm.xlu0 %417, %v237
        %v419 = vpop.permute.xlu0 %418
        %420 = vset.pattern.permute.xlu0 %v414
        %421 = vperm.xlu0 %420, %v237
        %v422 = vpop.permute.xlu0 %421
        %423 = vset.pattern.permute.xlu0 %v415
        %424 = vperm.xlu0 %423, %v237
        %v425 = vpop.permute.xlu0 %424
        %426 = vset.pattern.permute.xlu0 %v416
        %427 = vperm.xlu0 %426, %v237
        %v428 = vpop.permute.xlu0 %427
        %vm429 = vcmp.lt.s32.totalorder %v377, 0
        %vm430 = vcmp.lt.s32.totalorder %v378, 0
        %vm431 = vcmp.lt.s32.totalorder %v379, 0
        %vm432 = vcmp.lt.s32.totalorder %v380, 0
        %v433 = vadd.s32 %v377, 128
        %v434 = vadd.s32 %v378, 128
        %v435 = vadd.s32 %v379, 128
        %v436 = vadd.s32 %v380, 128
        %v437 = vsel %vm429, %v433, %v377
        %v438 = vsel %vm430, %v434, %v378
        %v439 = vsel %vm431, %v435, %v379
        %v440 = vsel %vm432, %v436, %v380
        %441 = vset.pattern.permute.xlu0 %v437
        %442 = vperm.xlu0 %441, %v237
        %v443 = vpop.permute.xlu0 %442
        %444 = vset.pattern.permute.xlu0 %v438
        %445 = vperm.xlu0 %444, %v237
        %v446 = vpop.permute.xlu0 %445
        %447 = vset.pattern.permute.xlu0 %v439
        %448 = vperm.xlu0 %447, %v237
        %v449 = vpop.permute.xlu0 %448
        %450 = vset.pattern.permute.xlu0 %v440
        %451 = vperm.xlu0 %450, %v237
        %v452 = vpop.permute.xlu0 %451
        %v453 = vmul.f32 %v443, %v395
        %v454 = vmul.f32 %v446, %v398
        %v455 = vmul.f32 %v449, %v401
        %v456 = vmul.f32 %v452, %v404
        %v457 = vadd.f32 %v419, %v453
        %v458 = vadd.f32 %v422, %v454
        %v459 = vadd.f32 %v425, %v455
        %v460 = vadd.f32 %v428, %v456
        %s461 = scalar_lea.vmem %s228, 32 [#allocation7]
        %462 = vst [vmem:[%s461] sm:$0xff] %v457
        %463 = vst [vmem:[%s461 + $0x8] sm:$0xff] %v458
        %464 = vst [vmem:[%s461 + $0x10] sm:$0xff] %v459
        %465 = vst [vmem:[%s461 + $0x18] sm:$0xff] %v460
        %s466 = sand.u32 %s104, 1
        %s467 = scalar_lea.sflag [#allocation4], %s466
        %s468 = sand.u32 %s104, 1
        %s469 = smul.addr %s468, 64
        %s470 = scalar_lea.vmem [#allocation7], %s469
        // Predicated region
        $region41: #{tpu_custom_call.1} parent=31 // pred_check
          %p471 = pneg %p114
        $region42: #{tpu_custom_call.1} parent=31 // pred_check_branch
          %473 = sbr.rel (%p471) target = $region44
        $region43: #{tpu_custom_call.1} parent=31 // pred_region
          %s474 = smul.u32 8, %s23
          %s476 = ssub.s32 1024, 1024
          %477 = vsyncadd %s467, %s476
          %s478 = smul.addr %s474, 128
          %s479 = scalar_lea.hbm %s3, %s478
          %s480 = sshll.u32 %s470, 4
          %s481 = int_to_ptr.vmem [resolvable:$true] %s480
          %486 = dma.vmem_to_hbm [thread:$0]  %s481, 1024, %s479, %s467, 128, 128, 8
        $region44: #{tpu_custom_call.1} parent=31 // pred_fallthru
          _
      $region32: #{tpu_custom_call.1} parent=5 // pred_fallthru
        _
      %p487 = scmp.le.s32.totalorder 2, %s18
      // Predicated region
      $region45: #{tpu_custom_call.1} parent=5 // pred_check
        %p488 = pneg %p487
      $region46: #{tpu_custom_call.1} parent=5 // pred_check_branch
        %490 = sbr.rel (%p488) target = $region48
      $region47: #{tpu_custom_call.1} parent=5 // pred_region
        %s491 = ssub.s32 %s18, 2
        // Predicated region
        $region49: #{tpu_custom_call.1} parent=47 // pred_check
          %p492 = pneg %p120
        $region50: #{tpu_custom_call.1} parent=47 // pred_check_branch
          %494 = sbr.rel (%p492) target = $region52
        $region51: #{tpu_custom_call.1} parent=47 // pred_region
          %s495 = sand.u32 %s105, 1
          %s496 = scalar_lea.sflag [#allocation4], %s495
          %s497 = sand.u32 %s105, 1
          %s498 = smul.addr %s497, 64
          %s499 = scalar_lea.vmem [#allocation7], %s498
          %500 = dma.done %s496, 1024
        $region52: #{tpu_custom_call.1} parent=47 // pred_fallthru
          _
      $region48: #{tpu_custom_call.1} parent=5 // pred_fallthru
        _
    $region6: #{tpu_custom_call.1} parent=1 // loop_footer
      %s22 = sadd.s32 1, %s18
    $region7: #{tpu_custom_call.1} parent=1 // loop_footer_branch
      %17 = sbr.rel target = $region3
    $region8: #{tpu_custom_call.1} parent=1 // loop_exit
      _
    %501 = vsyncpa [#allocation3], 1
    %s502 = scalar_lea.sflag [#allocation3], 1
    %503 = vsyncpa %s502, 1
    %504 = vsyncpa [#allocation6], 1
    %s505 = scalar_lea.sflag [#allocation6], 1
    %506 = vsyncpa %s505, 1
    %507 = vsyncpa [#allocation4], 1
    %s508 = scalar_lea.sflag [#allocation4], 1
    %509 = vsyncpa %s508, 1

</llo_original>
